<compile_context>
chip_gen: v7x
topology: tpu7x:2x2x1
jax: 0.10.0
libtpu: 0.0.40
codegen_flags: <defaults>
</compile_context>

<pallas_src>
import functools

import jax
import jax.numpy as jnp
import numpy as np
from jax.experimental import pallas as pl
from jax.experimental.pallas import tpu as pltpu


# ------------------------------- Small helpers ------------------------------- #

def _round_up(a, m):
    return ((a + m - 1) // m) * m


def _adaptive_bins(in_size, out_size):
    """PyTorch AdaptiveMaxPool bin boundaries: [floor(i*L/S), ceil((i+1)*L/S))."""
    bins = []
    for i in range(out_size):
        s = (i * in_size) // out_size
        e = -((-((i + 1) * in_size)) // out_size)
        bins.append((s, e))
    return bins


def _tpu_vmem_and_cores():
    """(VMEM bytes per TensorCore, is-multi-TensorCore) with conservative fallbacks."""
    vmem = 64 << 20                       # assume the smallest (v7x: 64 MiB) if unknown
    try:
        vmem = int(pltpu.get_tpu_info().vmem_capacity_bytes)
    except Exception:
        pass
    multi_core = True                     # conservative default: keep >= 2 grid steps
    try:
        kind = jax.devices()[0].device_kind.lower()
        if any(s in kind for s in ("v5 lite", "v5e", "v6 lite", "v6e", "lite")):
            multi_core = False            # single TensorCore per chip (v5e / v6e)
    except Exception:
        pass
    return vmem, multi_core


def _pick_nb(n, cin, vt, t, seg_pad, cp, budget, multi_core):
    """Largest divisor of n whose per-grid-step VMEM estimate fits `budget`.

    The estimate accounts for double-buffered input/output blocks, resident
    (folded) weights and the main in-kernel temporaries.
    """
    cin_s = _round_up(cin, 16)            # bf16 sublane padding
    fixed = 2 * (3 * cin * cp * 2 + cp * cp * 2 + 2 * 8 * cp * 4)   # weights + biases

    def need(nb):
        r = nb * seg_pad
        xin = 2 * nb * cin_s * _round_up(vt, 128) * 2        # input block, double-buffered
        out = 2 * nb * seg_pad * cp * 2                      # output block, double-buffered
        pool = 3 * nb * cin_s * _round_up(t, 128) * 2        # V-reduce / bin temporaries
        act = (3 * r * _round_up(cin, 128) * 2               # xf / x_prev / x_next (bf16)
               + 2 * r * cp * 4 + r * cp * 2)                # y, z (f32) and y16
        return fixed + xin + out + pool + act

    best = 1
    for cand in range(1, n + 1):
        if n % cand == 0 and need(cand) <= budget:
            best = cand
    if multi_core and n >= 2:
        best = min(best, n // 2)          # keep >= 2 parallel grid steps on 2-TC parts
        while n % best:
            best -= 1
    return max(best, 1)


# ------------------------------ Fused kernel -------------------------------- #

def _tcn_fused_kernel(x_ref, w1_ref, b1_ref, w2_ref, b2_ref, o_ref, *,
                      v, t, seg, seg_pad, bins):
    """Block shapes:
         x_ref  (Nb, Cin, V*T)    bf16  lane-dense, native NCVT order flattened
         w1_ref (3, Cin, Cp)      bf16  BN1 folded, Cout zero-padded to Cp
         b1_ref (1, Cp)           f32
         w2_ref (Cp, Cp)          bf16  BN2 folded
         b2_ref (1, Cp)           f32
         o_ref  (Nb, seg_pad, Cp) bf16
    """
    nb, cin = x_ref.shape[0], x_ref.shape[1]
    cp = o_ref.shape[2]
    r = nb * seg_pad

    # --- AdaptiveMaxPool2d((1, seg)) ------------------------------------------
    # V reduction directly on the flat lane axis (V outer, T inner): V-1 VPU maxes.
    vmax = x_ref[:, :, 0:t]
    for vi in range(1, v):
        vmax = jnp.maximum(vmax, x_ref[:, :, vi * t:(vi + 1) * t])   # (Nb, Cin, T)
    # Adaptive bins over T (static PyTorch bin boundaries).
    cols = [jnp.max(vmax[:, :, s:e], axis=2) for (s, e) in bins]     # seg x (Nb, Cin)

    # Assemble the pooled block and its +/-1 neighbours (zero padded per item)
    # directly in (Nb, seg_pad, Cin) orientation.  The shifts are built at stack
    # time so they never cross batch-item boundaries, and seg_pad % 16 == 0 makes
    # the (Nb*seg_pad, Cin) reshape a tile-aligned leading-dim merge.
    zero = jnp.zeros((nb, cin), dtype=x_ref.dtype)
    tail = [zero] * (seg_pad - seg)
    xf = jnp.stack(cols + tail, axis=1).reshape(r, cin)                     # p[s]
    x_prev = jnp.stack([zero] + cols[:-1] + tail, axis=1).reshape(r, cin)   # p[s-1]
    x_next = jnp.stack(cols[1:] + [zero] + tail, axis=1).reshape(r, cin)    # p[s+1]

    # --- conv(1x3, pad=1) + folded BN1 + ReLU: three per-tap MXU dots ----------
    y = (jnp.dot(x_prev, w1_ref[0], preferred_element_type=jnp.float32)
         + jnp.dot(xf, w1_ref[1], preferred_element_type=jnp.float32)
         + jnp.dot(x_next, w1_ref[2], preferred_element_type=jnp.float32)
         + b1_ref[...])
    y = jnp.maximum(y, 0.0)                                           # (r, Cp) f32

    # TODO(synk): Dropout2d(0.2) is identity in eval mode; training-mode channel
    # dropout (and BatchNorm running-stat updates) are not implemented here.

    # --- conv(1x1) + folded BN2 + ReLU ------------------------------------------
    z = jnp.dot(y.astype(jnp.bfloat16), w2_ref[...],
                preferred_element_type=jnp.float32) + b2_ref[...]
    z = jnp.maximum(z, 0.0)                                           # (r, Cp) f32

    o_ref[...] = z.astype(o_ref.dtype).reshape(nb, seg_pad, cp)


# --------------------------------- Wrapper ----------------------------------- #

def _fold_bn_params(params, cout, cp):
    """Fold eval-mode BatchNorm into conv weights/bias; pad Cout lanes; bf16 weights."""
    pad_c = ((0, 0), (0, cp - cout))
    s1, t1 = params["bn1_scale"], params["bn1_shift"]
    s2, t2 = params["bn2_scale"], params["bn2_shift"]
    w1 = jnp.pad((params["w1"] * s1[None]).astype(jnp.bfloat16),
                 ((0, 0), (0, 0), (0, cp - cout)))                    # (3, Cin, Cp)
    b1 = jnp.pad(params["b1"] * s1 + t1, pad_c)                       # (1, Cp) f32
    w2 = jnp.pad((params["w2"] * s2).astype(jnp.bfloat16),
                 ((0, cp - cout), (0, cp - cout)))                    # (Cp, Cp)
    b2 = jnp.pad(params["b2"] * s2 + t2, pad_c)                       # (1, Cp) f32
    return w1, b1, w2, b2


def unit_tcn_forward(x_ncvt, params, seg):
    N, Cin, V, T = x_ncvt.shape
    Cout = params["w2"].shape[1]
    Cp = _round_up(Cout, 128)             # lane-dense output stores
    seg_pad = _round_up(seg, 16)          # bf16 sublane tile -> tile-aligned row merge
    bins = tuple(_adaptive_bins(T, seg))

    vmem_cap, multi_core = _tpu_vmem_and_cores()
    vmem_limit = max(32 << 20, int(0.6 * vmem_cap))     # headroom on 64 MiB v7x parts
    Nb = _pick_nb(N, Cin, V * T, T, seg_pad, Cp,
                  budget=vmem_limit // 2, multi_core=multi_core)

    # Stream x lane-dense and in bf16 (free contiguous reshape, no big transpose).
    # Ideally the caller already provides bf16 / the cast fuses with the producer.
    x = x_ncvt.reshape(N, Cin, V * T).astype(jnp.bfloat16)
    w1, b1, w2, b2 = _fold_bn_params(params, Cout, Cp)

    kernel = functools.partial(_tcn_fused_kernel, v=V, t=T, seg=seg,
                               seg_pad=seg_pad, bins=bins)
    out = pl.pallas_call(
        kernel,
        out_shape=jax.ShapeDtypeStruct((N, seg_pad, Cp), jnp.bfloat16),
        grid=(N // Nb,),
        in_specs=[
            pl.BlockSpec((Nb, Cin, V * T), lambda n: (n, 0, 0)),   # x (bf16)
            pl.BlockSpec((3, Cin, Cp), lambda n: (0, 0, 0)),       # w1 (BN folded, bf16)
            pl.BlockSpec((1, Cp), lambda n: (0, 0)),               # b1 (f32)
            pl.BlockSpec((Cp, Cp), lambda n: (0, 0)),              # w2 (BN folded, bf16)
            pl.BlockSpec((1, Cp), lambda n: (0, 0)),               # b2 (f32)
        ],
        out_specs=pl.BlockSpec((Nb, seg_pad, Cp), lambda n: (n, 0, 0)),
        compiler_params=pltpu.CompilerParams(
            dimension_semantics=("parallel",),
            vmem_limit_bytes=int(vmem_limit),
        ),
    )(x, w1, b1, w2, b2)

    # Tiny epilogue outside the kernel: slice padding, back to PyTorch layout.
    out = out[:, :seg, :Cout].astype(x_ncvt.dtype)          # (N, seg, Cout)
    return jnp.transpose(out, (0, 2, 1))[:, :, None, :]     # (N, Cout, 1, seg)


# ------------------------- Parameters (deterministic) ------------------------ #

def init_params(key, in_channels, out_channels, eps=1e-5):
    ks = jax.random.split(key, 14)
    w1 = 0.1 * jax.random.normal(ks[0], (3, in_channels, out_channels), jnp.float32)
    b1 = 0.1 * jax.random.normal(ks[1], (1, out_channels), jnp.float32)
    g1 = 1.0 + 0.1 * jax.random.normal(ks[2], (1, out_channels), jnp.float32)
    be1 = 0.1 * jax.random.normal(ks[3], (1, out_channels), jnp.float32)
    m1 = 0.1 * jax.random.normal(ks[4], (1, out_channels), jnp.float32)
    v1 = 0.5 + jnp.abs(jax.random.normal(ks[5], (1, out_channels), jnp.float32))

    w2 = 0.1 * jax.random.normal(ks[6], (out_channels, out_channels), jnp.float32)
    b2 = 0.1 * jax.random.normal(ks[7], (1, out_channels), jnp.float32)
    g2 = 1.0 + 0.1 * jax.random.normal(ks[8], (1, out_channels), jnp.float32)
    be2 = 0.1 * jax.random.normal(ks[9], (1, out_channels), jnp.float32)
    m2 = 0.1 * jax.random.normal(ks[10], (1, out_channels), jnp.float32)
    v2 = 0.5 + jnp.abs(jax.random.normal(ks[11], (1, out_channels), jnp.float32))

    s1 = g1 / jnp.sqrt(v1 + eps)
    s2 = g2 / jnp.sqrt(v2 + eps)
    return {
        "w1": w1, "b1": b1, "bn1_scale": s1, "bn1_shift": be1 - m1 * s1,
        "w2": w2, "b2": b2, "bn2_scale": s2, "bn2_shift": be2 - m2 * s2,
    }


# ---------------------------- Pure-JAX reference ----------------------------- #

def reference_forward(x, params, seg):
    """Faithful f32 eval-mode reference (unfused BN, PyTorch adaptive bins)."""
    N, Cin, V, T = x.shape
    bins = _adaptive_bins(T, seg)
    cols = [jnp.max(x[:, :, :, s:e], axis=(2, 3)) for (s, e) in bins]  # (N, Cin) each
    p = jnp.stack(cols, axis=-1)                                       # (N, Cin, seg)
    pp = jnp.pad(p, ((0, 0), (0, 0), (1, 1)))
    Cout = params["w1"].shape[2]
    y = jnp.zeros((N, Cout, seg), jnp.float32)
    for k in range(3):
        y = y + jnp.einsum("nct,cd->ndt", pp[:, :, k:k + seg], params["w1"][k])
    y = y + params["b1"].T[None]
    y = jnp.maximum(y * params["bn1_scale"].T[None] + params["bn1_shift"].T[None], 0.0)
    z = jnp.einsum("nct,cd->ndt", y, params["w2"]) + params["b2"].T[None]
    z = jnp.maximum(z * params["bn2_scale"].T[None] + params["bn2_shift"].T[None], 0.0)
    return z[:, :, None, :]


# ------------------------------------ Main ----------------------------------- #

if __name__ == "__main__":
    key = jax.random.PRNGKey(0)
    k_x, k_p = jax.random.split(key)

    N, C_IN, C_OUT, V, T, SEG = 2, 4, 8, 16, 16, 8
    x = jax.random.normal(k_x, (N, C_IN, V, T), jnp.float32)
    params = init_params(k_p, C_IN, C_OUT)

    out = jax.block_until_ready(unit_tcn_forward(x, params, SEG))
    ref = jax.block_until_ready(reference_forward(x, params, SEG))

    assert out.shape == (N, C_OUT, 1, SEG), out.shape
    # Tolerance loosened vs. the pure-f32 reference because x, the folded conv
    # weights, the inter-conv activation and the output are rounded to bf16
    # (f32 MXU accumulation is kept).
    assert np.allclose(np.asarray(out, dtype=np.float32), np.asarray(ref),
                       rtol=5e-2, atol=5e-2)

    print("KERNEL_OK")
</pallas_src>

<mosaic_0001>
module attributes {stable_mosaic.version = 11 : i64} {
  func.func @_tcn_fused_kernel(%arg0: i32, %arg1: memref<1x4x256xbf16, #tpu.memory_space<vmem>>, %arg2: memref<3x4x128xbf16, #tpu.memory_space<vmem>>, %arg3: memref<1x128xf32, #tpu.memory_space<vmem>>, %arg4: memref<128x128xbf16, #tpu.memory_space<vmem>>, %arg5: memref<1x128xf32, #tpu.memory_space<vmem>>, %arg6: memref<1x16x128xbf16, #tpu.memory_space<vmem>>) attributes {dimension_semantics = [#tpu.dimension_semantics<parallel>], iteration_bounds = array<i64: 2>, scalar_prefetch = 0 : i64, scratch_operands = 0 : i64, tpu.core_type = #tpu.core_type<tc>, window_params = [{transform_indices = @transform_0, window_bounds = array<i64: 1, 4, 256>}, {pipeline_mode = #tpu.pipeline_mode<synchronous>, transform_indices = @transform_1, window_bounds = array<i64: 3, 4, 128>}, {pipeline_mode = #tpu.pipeline_mode<synchronous>, transform_indices = @transform_2, window_bounds = array<i64: 1, 128>}, {pipeline_mode = #tpu.pipeline_mode<synchronous>, transform_indices = @transform_3, window_bounds = array<i64: 128, 128>}, {pipeline_mode = #tpu.pipeline_mode<synchronous>, transform_indices = @transform_4, window_bounds = array<i64: 1, 128>}, {transform_indices = @transform_5, window_bounds = array<i64: 1, 16, 128>}]} {
    %c0 = arith.constant 0 : index
    %c0_0 = arith.constant 0 : index
    %c0_1 = arith.constant 0 : index
    %0 = vector.load %arg1[%c0, %c0_0, %c0_1] : memref<1x4x256xbf16, #tpu.memory_space<vmem>>, vector<1x4x16xbf16>
    %c0_2 = arith.constant 0 : index
    %c0_3 = arith.constant 0 : index
    %c16 = arith.constant 16 : index
    %1 = vector.load %arg1[%c0_2, %c0_3, %c16] : memref<1x4x256xbf16, #tpu.memory_space<vmem>>, vector<1x4x16xbf16>
    %2 = arith.maximumf %0, %1 : vector<1x4x16xbf16>
    %c0_4 = arith.constant 0 : index
    %c0_5 = arith.constant 0 : index
    %c32 = arith.constant 32 : index
    %3 = vector.load %arg1[%c0_4, %c0_5, %c32] : memref<1x4x256xbf16, #tpu.memory_space<vmem>>, vector<1x4x16xbf16>
    %4 = arith.maximumf %2, %3 : vector<1x4x16xbf16>
    %c0_6 = arith.constant 0 : index
    %c0_7 = arith.constant 0 : index
    %c48 = arith.constant 48 : index
    %5 = vector.load %arg1[%c0_6, %c0_7, %c48] : memref<1x4x256xbf16, #tpu.memory_space<vmem>>, vector<1x4x16xbf16>
    %6 = arith.maximumf %4, %5 : vector<1x4x16xbf16>
    %c0_8 = arith.constant 0 : index
    %c0_9 = arith.constant 0 : index
    %c64 = arith.constant 64 : index
    %7 = vector.load %arg1[%c0_8, %c0_9, %c64] : memref<1x4x256xbf16, #tpu.memory_space<vmem>>, vector<1x4x16xbf16>
    %8 = arith.maximumf %6, %7 : vector<1x4x16xbf16>
    %c0_10 = arith.constant 0 : index
    %c0_11 = arith.constant 0 : index
    %c80 = arith.constant 80 : index
    %9 = vector.load %arg1[%c0_10, %c0_11, %c80] : memref<1x4x256xbf16, #tpu.memory_space<vmem>>, vector<1x4x16xbf16>
    %10 = arith.maximumf %8, %9 : vector<1x4x16xbf16>
    %c0_12 = arith.constant 0 : index
    %c0_13 = arith.constant 0 : index
    %c96 = arith.constant 96 : index
    %11 = vector.load %arg1[%c0_12, %c0_13, %c96] : memref<1x4x256xbf16, #tpu.memory_space<vmem>>, vector<1x4x16xbf16>
    %12 = arith.maximumf %10, %11 : vector<1x4x16xbf16>
    %c0_14 = arith.constant 0 : index
    %c0_15 = arith.constant 0 : index
    %c112 = arith.constant 112 : index
    %13 = vector.load %arg1[%c0_14, %c0_15, %c112] : memref<1x4x256xbf16, #tpu.memory_space<vmem>>, vector<1x4x16xbf16>
    %14 = arith.maximumf %12, %13 : vector<1x4x16xbf16>
    %c0_16 = arith.constant 0 : index
    %c0_17 = arith.constant 0 : index
    %c128 = arith.constant 128 : index
    %15 = vector.load %arg1[%c0_16, %c0_17, %c128] : memref<1x4x256xbf16, #tpu.memory_space<vmem>>, vector<1x4x16xbf16>
    %16 = arith.maximumf %14, %15 : vector<1x4x16xbf16>
    %c0_18 = arith.constant 0 : index
    %c0_19 = arith.constant 0 : index
    %c144 = arith.constant 144 : index
    %17 = vector.load %arg1[%c0_18, %c0_19, %c144] : memref<1x4x256xbf16, #tpu.memory_space<vmem>>, vector<1x4x16xbf16>
    %18 = arith.maximumf %16, %17 : vector<1x4x16xbf16>
    %c0_20 = arith.constant 0 : index
    %c0_21 = arith.constant 0 : index
    %c160 = arith.constant 160 : index
    %19 = vector.load %arg1[%c0_20, %c0_21, %c160] : memref<1x4x256xbf16, #tpu.memory_space<vmem>>, vector<1x4x16xbf16>
    %20 = arith.maximumf %18, %19 : vector<1x4x16xbf16>
    %c0_22 = arith.constant 0 : index
    %c0_23 = arith.constant 0 : index
    %c176 = arith.constant 176 : index
    %21 = vector.load %arg1[%c0_22, %c0_23, %c176] : memref<1x4x256xbf16, #tpu.memory_space<vmem>>, vector<1x4x16xbf16>
    %22 = arith.maximumf %20, %21 : vector<1x4x16xbf16>
    %c0_24 = arith.constant 0 : index
    %c0_25 = arith.constant 0 : index
    %c192 = arith.constant 192 : index
    %23 = vector.load %arg1[%c0_24, %c0_25, %c192] : memref<1x4x256xbf16, #tpu.memory_space<vmem>>, vector<1x4x16xbf16>
    %24 = arith.maximumf %22, %23 : vector<1x4x16xbf16>
    %c0_26 = arith.constant 0 : index
    %c0_27 = arith.constant 0 : index
    %c208 = arith.constant 208 : index
    %25 = vector.load %arg1[%c0_26, %c0_27, %c208] : memref<1x4x256xbf16, #tpu.memory_space<vmem>>, vector<1x4x16xbf16>
    %26 = arith.maximumf %24, %25 : vector<1x4x16xbf16>
    %c0_28 = arith.constant 0 : index
    %c0_29 = arith.constant 0 : index
    %c224 = arith.constant 224 : index
    %27 = vector.load %arg1[%c0_28, %c0_29, %c224] : memref<1x4x256xbf16, #tpu.memory_space<vmem>>, vector<1x4x16xbf16>
    %28 = arith.maximumf %26, %27 : vector<1x4x16xbf16>
    %c0_30 = arith.constant 0 : index
    %c0_31 = arith.constant 0 : index
    %c240 = arith.constant 240 : index
    %29 = vector.load %arg1[%c0_30, %c0_31, %c240] : memref<1x4x256xbf16, #tpu.memory_space<vmem>>, vector<1x4x16xbf16>
    %30 = arith.maximumf %28, %29 : vector<1x4x16xbf16>
    %31 = vector.extract_strided_slice %30 {offsets = [0, 0, 0], sizes = [1, 4, 2], strides = [1, 1, 1]} : vector<1x4x16xbf16> to vector<1x4x2xbf16>
    %cst = arith.constant dense<0xFF80> : vector<1x4xbf16>
    %32 = vector.multi_reduction <maximumf>, %31, %cst [2] : vector<1x4x2xbf16> to vector<1x4xbf16>
    %33 = vector.extract_strided_slice %30 {offsets = [0, 0, 2], sizes = [1, 4, 2], strides = [1, 1, 1]} : vector<1x4x16xbf16> to vector<1x4x2xbf16>
    %cst_32 = arith.constant dense<0xFF80> : vector<1x4xbf16>
    %34 = vector.multi_reduction <maximumf>, %33, %cst_32 [2] : vector<1x4x2xbf16> to vector<1x4xbf16>
    %35 = vector.extract_strided_slice %30 {offsets = [0, 0, 4], sizes = [1, 4, 2], strides = [1, 1, 1]} : vector<1x4x16xbf16> to vector<1x4x2xbf16>
    %cst_33 = arith.constant dense<0xFF80> : vector<1x4xbf16>
    %36 = vector.multi_reduction <maximumf>, %35, %cst_33 [2] : vector<1x4x2xbf16> to vector<1x4xbf16>
    %37 = vector.extract_strided_slice %30 {offsets = [0, 0, 6], sizes = [1, 4, 2], strides = [1, 1, 1]} : vector<1x4x16xbf16> to vector<1x4x2xbf16>
    %cst_34 = arith.constant dense<0xFF80> : vector<1x4xbf16>
    %38 = vector.multi_reduction <maximumf>, %37, %cst_34 [2] : vector<1x4x2xbf16> to vector<1x4xbf16>
    %39 = vector.extract_strided_slice %30 {offsets = [0, 0, 8], sizes = [1, 4, 2], strides = [1, 1, 1]} : vector<1x4x16xbf16> to vector<1x4x2xbf16>
    %cst_35 = arith.constant dense<0xFF80> : vector<1x4xbf16>
    %40 = vector.multi_reduction <maximumf>, %39, %cst_35 [2] : vector<1x4x2xbf16> to vector<1x4xbf16>
    %41 = vector.extract_strided_slice %30 {offsets = [0, 0, 10], sizes = [1, 4, 2], strides = [1, 1, 1]} : vector<1x4x16xbf16> to vector<1x4x2xbf16>
    %cst_36 = arith.constant dense<0xFF80> : vector<1x4xbf16>
    %42 = vector.multi_reduction <maximumf>, %41, %cst_36 [2] : vector<1x4x2xbf16> to vector<1x4xbf16>
    %43 = vector.extract_strided_slice %30 {offsets = [0, 0, 12], sizes = [1, 4, 2], strides = [1, 1, 1]} : vector<1x4x16xbf16> to vector<1x4x2xbf16>
    %cst_37 = arith.constant dense<0xFF80> : vector<1x4xbf16>
    %44 = vector.multi_reduction <maximumf>, %43, %cst_37 [2] : vector<1x4x2xbf16> to vector<1x4xbf16>
    %45 = vector.extract_strided_slice %30 {offsets = [0, 0, 14], sizes = [1, 4, 2], strides = [1, 1, 1]} : vector<1x4x16xbf16> to vector<1x4x2xbf16>
    %cst_38 = arith.constant dense<0xFF80> : vector<1x4xbf16>
    %46 = vector.multi_reduction <maximumf>, %45, %cst_38 [2] : vector<1x4x2xbf16> to vector<1x4xbf16>
    %cst_39 = arith.constant 0.000000e+00 : bf16
    %47 = vector.broadcast %cst_39 : bf16 to vector<1x4xbf16>
    %48 = vector.shape_cast %32 : vector<1x4xbf16> to vector<1x1x4xbf16>
    %49 = vector.shape_cast %34 : vector<1x4xbf16> to vector<1x1x4xbf16>
    %50 = vector.shape_cast %36 : vector<1x4xbf16> to vector<1x1x4xbf16>
    %51 = vector.shape_cast %38 : vector<1x4xbf16> to vector<1x1x4xbf16>
    %52 = vector.shape_cast %40 : vector<1x4xbf16> to vector<1x1x4xbf16>
    %53 = vector.shape_cast %42 : vector<1x4xbf16> to vector<1x1x4xbf16>
    %54 = vector.shape_cast %44 : vector<1x4xbf16> to vector<1x1x4xbf16>
    %55 = vector.shape_cast %46 : vector<1x4xbf16> to vector<1x1x4xbf16>
    %56 = vector.shape_cast %47 : vector<1x4xbf16> to vector<1x1x4xbf16>
    %57 = vector.shape_cast %47 : vector<1x4xbf16> to vector<1x1x4xbf16>
    %58 = vector.shape_cast %47 : vector<1x4xbf16> to vector<1x1x4xbf16>
    %59 = vector.shape_cast %47 : vector<1x4xbf16> to vector<1x1x4xbf16>
    %60 = vector.shape_cast %47 : vector<1x4xbf16> to vector<1x1x4xbf16>
    %61 = vector.shape_cast %47 : vector<1x4xbf16> to vector<1x1x4xbf16>
    %62 = vector.shape_cast %47 : vector<1x4xbf16> to vector<1x1x4xbf16>
    %63 = vector.shape_cast %47 : vector<1x4xbf16> to vector<1x1x4xbf16>
    %64 = tpu.concatenate %48, %49, %50, %51, %52, %53, %54, %55, %56, %57, %58, %59, %60, %61, %62, %63 in 1 : vector<1x1x4xbf16>, vector<1x1x4xbf16>, vector<1x1x4xbf16>, vector<1x1x4xbf16>, vector<1x1x4xbf16>, vector<1x1x4xbf16>, vector<1x1x4xbf16>, vector<1x1x4xbf16>, vector<1x1x4xbf16>, vector<1x1x4xbf16>, vector<1x1x4xbf16>, vector<1x1x4xbf16>, vector<1x1x4xbf16>, vector<1x1x4xbf16>, vector<1x1x4xbf16>, vector<1x1x4xbf16> -> vector<1x16x4xbf16>
    %65 = vector.shape_cast %64 : vector<1x16x4xbf16> to vector<16x4xbf16>
    %66 = vector.shape_cast %47 : vector<1x4xbf16> to vector<1x1x4xbf16>
    %67 = vector.shape_cast %32 : vector<1x4xbf16> to vector<1x1x4xbf16>
    %68 = vector.shape_cast %34 : vector<1x4xbf16> to vector<1x1x4xbf16>
    %69 = vector.shape_cast %36 : vector<1x4xbf16> to vector<1x1x4xbf16>
    %70 = vector.shape_cast %38 : vector<1x4xbf16> to vector<1x1x4xbf16>
    %71 = vector.shape_cast %40 : vector<1x4xbf16> to vector<1x1x4xbf16>
    %72 = vector.shape_cast %42 : vector<1x4xbf16> to vector<1x1x4xbf16>
    %73 = vector.shape_cast %44 : vector<1x4xbf16> to vector<1x1x4xbf16>
    %74 = vector.shape_cast %47 : vector<1x4xbf16> to vector<1x1x4xbf16>
    %75 = vector.shape_cast %47 : vector<1x4xbf16> to vector<1x1x4xbf16>
    %76 = vector.shape_cast %47 : vector<1x4xbf16> to vector<1x1x4xbf16>
    %77 = vector.shape_cast %47 : vector<1x4xbf16> to vector<1x1x4xbf16>
    %78 = vector.shape_cast %47 : vector<1x4xbf16> to vector<1x1x4xbf16>
    %79 = vector.shape_cast %47 : vector<1x4xbf16> to vector<1x1x4xbf16>
    %80 = vector.shape_cast %47 : vector<1x4xbf16> to vector<1x1x4xbf16>
    %81 = vector.shape_cast %47 : vector<1x4xbf16> to vector<1x1x4xbf16>
    %82 = tpu.concatenate %66, %67, %68, %69, %70, %71, %72, %73, %74, %75, %76, %77, %78, %79, %80, %81 in 1 : vector<1x1x4xbf16>, vector<1x1x4xbf16>, vector<1x1x4xbf16>, vector<1x1x4xbf16>, vector<1x1x4xbf16>, vector<1x1x4xbf16>, vector<1x1x4xbf16>, vector<1x1x4xbf16>, vector<1x1x4xbf16>, vector<1x1x4xbf16>, vector<1x1x4xbf16>, vector<1x1x4xbf16>, vector<1x1x4xbf16>, vector<1x1x4xbf16>, vector<1x1x4xbf16>, vector<1x1x4xbf16> -> vector<1x16x4xbf16>
    %83 = vector.shape_cast %82 : vector<1x16x4xbf16> to vector<16x4xbf16>
    %84 = vector.shape_cast %34 : vector<1x4xbf16> to vector<1x1x4xbf16>
    %85 = vector.shape_cast %36 : vector<1x4xbf16> to vector<1x1x4xbf16>
    %86 = vector.shape_cast %38 : vector<1x4xbf16> to vector<1x1x4xbf16>
    %87 = vector.shape_cast %40 : vector<1x4xbf16> to vector<1x1x4xbf16>
    %88 = vector.shape_cast %42 : vector<1x4xbf16> to vector<1x1x4xbf16>
    %89 = vector.shape_cast %44 : vector<1x4xbf16> to vector<1x1x4xbf16>
    %90 = vector.shape_cast %46 : vector<1x4xbf16> to vector<1x1x4xbf16>
    %91 = vector.shape_cast %47 : vector<1x4xbf16> to vector<1x1x4xbf16>
    %92 = vector.shape_cast %47 : vector<1x4xbf16> to vector<1x1x4xbf16>
    %93 = vector.shape_cast %47 : vector<1x4xbf16> to vector<1x1x4xbf16>
    %94 = vector.shape_cast %47 : vector<1x4xbf16> to vector<1x1x4xbf16>
    %95 = vector.shape_cast %47 : vector<1x4xbf16> to vector<1x1x4xbf16>
    %96 = vector.shape_cast %47 : vector<1x4xbf16> to vector<1x1x4xbf16>
    %97 = vector.shape_cast %47 : vector<1x4xbf16> to vector<1x1x4xbf16>
    %98 = vector.shape_cast %47 : vector<1x4xbf16> to vector<1x1x4xbf16>
    %99 = vector.shape_cast %47 : vector<1x4xbf16> to vector<1x1x4xbf16>
    %100 = tpu.concatenate %84, %85, %86, %87, %88, %89, %90, %91, %92, %93, %94, %95, %96, %97, %98, %99 in 1 : vector<1x1x4xbf16>, vector<1x1x4xbf16>, vector<1x1x4xbf16>, vector<1x1x4xbf16>, vector<1x1x4xbf16>, vector<1x1x4xbf16>, vector<1x1x4xbf16>, vector<1x1x4xbf16>, vector<1x1x4xbf16>, vector<1x1x4xbf16>, vector<1x1x4xbf16>, vector<1x1x4xbf16>, vector<1x1x4xbf16>, vector<1x1x4xbf16>, vector<1x1x4xbf16>, vector<1x1x4xbf16> -> vector<1x16x4xbf16>
    %101 = vector.shape_cast %100 : vector<1x16x4xbf16> to vector<16x4xbf16>
    %c0_40 = arith.constant 0 : index
    %c0_41 = arith.constant 0 : index
    %c0_42 = arith.constant 0 : index
    %102 = vector.load %arg2[%c0_40, %c0_41, %c0_42] : memref<3x4x128xbf16, #tpu.memory_space<vmem>>, vector<1x4x128xbf16>
    %103 = vector.shape_cast %102 : vector<1x4x128xbf16> to vector<4x128xbf16>
    %cst_43 = arith.constant dense<0.000000e+00> : vector<16x128xf32>
    %104 = tpu.matmul %83, %103, %cst_43 {dimension_numbers = #tpu.dot_dimension_numbers<[1], [0], [0], [1], [0, 0, 1, 1], [], []>} : vector<16x4xbf16>, vector<4x128xbf16>, vector<16x128xf32> -> vector<16x128xf32>
    %c1 = arith.constant 1 : index
    %c0_44 = arith.constant 0 : index
    %c0_45 = arith.constant 0 : index
    %105 = vector.load %arg2[%c1, %c0_44, %c0_45] : memref<3x4x128xbf16, #tpu.memory_space<vmem>>, vector<1x4x128xbf16>
    %106 = vector.shape_cast %105 : vector<1x4x128xbf16> to vector<4x128xbf16>
    %cst_46 = arith.constant dense<0.000000e+00> : vector<16x128xf32>
    %107 = tpu.matmul %65, %106, %cst_46 {dimension_numbers = #tpu.dot_dimension_numbers<[1], [0], [0], [1], [0, 0, 1, 1], [], []>} : vector<16x4xbf16>, vector<4x128xbf16>, vector<16x128xf32> -> vector<16x128xf32>
    %108 = arith.addf %104, %107 : vector<16x128xf32>
    %c2 = arith.constant 2 : index
    %c0_47 = arith.constant 0 : index
    %c0_48 = arith.constant 0 : index
    %109 = vector.load %arg2[%c2, %c0_47, %c0_48] : memref<3x4x128xbf16, #tpu.memory_space<vmem>>, vector<1x4x128xbf16>
    %110 = vector.shape_cast %109 : vector<1x4x128xbf16> to vector<4x128xbf16>
    %cst_49 = arith.constant dense<0.000000e+00> : vector<16x128xf32>
    %111 = tpu.matmul %101, %110, %cst_49 {dimension_numbers = #tpu.dot_dimension_numbers<[1], [0], [0], [1], [0, 0, 1, 1], [], []>} : vector<16x4xbf16>, vector<4x128xbf16>, vector<16x128xf32> -> vector<16x128xf32>
    %112 = arith.addf %108, %111 : vector<16x128xf32>
    %c0_50 = arith.constant 0 : index
    %c0_51 = arith.constant 0 : index
    %113 = vector.load %arg3[%c0_50, %c0_51] : memref<1x128xf32, #tpu.memory_space<vmem>>, vector<1x128xf32>
    %114 = vector.broadcast %113 : vector<1x128xf32> to vector<16x128xf32>
    %115 = arith.addf %112, %114 : vector<16x128xf32>
    %cst_52 = arith.constant 0.000000e+00 : f32
    %116 = vector.broadcast %cst_52 : f32 to vector<16x128xf32>
    %117 = arith.maximumf %115, %116 : vector<16x128xf32>
    %118 = arith.truncf %117 : vector<16x128xf32> to vector<16x128xbf16>
    %c0_53 = arith.constant 0 : index
    %c0_54 = arith.constant 0 : index
    %119 = vector.load %arg4[%c0_53, %c0_54] : memref<128x128xbf16, #tpu.memory_space<vmem>>, vector<128x128xbf16>
    %cst_55 = arith.constant dense<0.000000e+00> : vector<16x128xf32>
    %120 = tpu.matmul %118, %119, %cst_55 {dimension_numbers = #tpu.dot_dimension_numbers<[1], [0], [0], [1], [0, 0, 1, 1], [], []>} : vector<16x128xbf16>, vector<128x128xbf16>, vector<16x128xf32> -> vector<16x128xf32>
    %c0_56 = arith.constant 0 : index
    %c0_57 = arith.constant 0 : index
    %121 = vector.load %arg5[%c0_56, %c0_57] : memref<1x128xf32, #tpu.memory_space<vmem>>, vector<1x128xf32>
    %122 = vector.broadcast %121 : vector<1x128xf32> to vector<16x128xf32>
    %123 = arith.addf %120, %122 : vector<16x128xf32>
    %cst_58 = arith.constant 0.000000e+00 : f32
    %124 = vector.broadcast %cst_58 : f32 to vector<16x128xf32>
    %125 = arith.maximumf %123, %124 : vector<16x128xf32>
    %126 = arith.truncf %125 : vector<16x128xf32> to vector<16x128xbf16>
    %127 = vector.shape_cast %126 : vector<16x128xbf16> to vector<1x16x128xbf16>
    %c0_59 = arith.constant 0 : index
    %c0_60 = arith.constant 0 : index
    %c0_61 = arith.constant 0 : index
    %128 = vector.load %arg6[%c0_59, %c0_60, %c0_61] : memref<1x16x128xbf16, #tpu.memory_space<vmem>>, vector<1x16x128xbf16>
    tpu.vector_store %arg6[%c0_59, %c0_60, %c0_61], %127 {strides = array<i32>} : memref<1x16x128xbf16, #tpu.memory_space<vmem>>, vector<1x16x128xbf16>,
    return
  }
  func.func @transform_0(%arg0: i32) -> (i32, i32, i32) {
    %c0_i32 = arith.constant 0 : i32
    %c0_i32_0 = arith.constant 0 : i32
    %c0_i32_1 = arith.constant 0 : i32
    return %arg0, %c0_i32, %c0_i32_0 : i32, i32, i32
  }
  func.func @transform_1(%arg0: i32) -> (i32, i32, i32) {
    %c0_i32 = arith.constant 0 : i32
    %c0_i32_0 = arith.constant 0 : i32
    %c0_i32_1 = arith.constant 0 : i32
    %c0_i32_2 = arith.constant 0 : i32
    return %c0_i32, %c0_i32_0, %c0_i32_1 : i32, i32, i32
  }
  func.func @transform_2(%arg0: i32) -> (i32, i32) {
    %c0_i32 = arith.constant 0 : i32
    %c0_i32_0 = arith.constant 0 : i32
    %c0_i32_1 = arith.constant 0 : i32
    return %c0_i32, %c0_i32_0 : i32, i32
  }
  func.func @transform_3(%arg0: i32) -> (i32, i32) {
    %c0_i32 = arith.constant 0 : i32
    %c0_i32_0 = arith.constant 0 : i32
    %c0_i32_1 = arith.constant 0 : i32
    return %c0_i32, %c0_i32_0 : i32, i32
  }
  func.func @transform_4(%arg0: i32) -> (i32, i32) {
    %c0_i32 = arith.constant 0 : i32
    %c0_i32_0 = arith.constant 0 : i32
    %c0_i32_1 = arith.constant 0 : i32
    return %c0_i32, %c0_i32_0 : i32, i32
  }
  func.func @transform_5(%arg0: i32) -> (i32, i32, i32) {
    %c0_i32 = arith.constant 0 : i32
    %c0_i32_0 = arith.constant 0 : i32
    %c0_i32_1 = arith.constant 0 : i32
    return %arg0, %c0_i32, %c0_i32_0 : i32, i32, i32
  }
}

</mosaic_0001>

<llo_original>
// kernel: tpu_custom_call.1
$region0: #{tpu_custom_call.1}
  #allocation0 [shape = 'u32[]', space=smem, size = 0x4, offset = 0x4, fixed_abs, tag = 'smem constant byte address 0x4 - core index']
  #allocation1 [shape = 'u32[144,128]{1,0:T(1,128)}', space=vmem, size = 0x12000, scoped, tag = 'internal scratch']
  %s0 = inlined_call_operand.hbm [shape: bf16[2,4,256], index: 0, kind: input, shape index: {}]
  %s1 = inlined_call_operand.hbm [shape: bf16[3,4,128], index: 1, kind: input, shape index: {}]
  %s2 = inlined_call_operand.vmem [shape: f32[1,128], index: 2, kind: input, shape index: {}]
  %s3 = inlined_call_operand.hbm [shape: bf16[128,128], index: 3, kind: input, shape index: {}]
  %s4 = inlined_call_operand.vmem [shape: f32[1,128], index: 4, kind: input, shape index: {}]
  %s5 = inlined_call_operand.hbm [shape: bf16[2,16,128], index: 5, kind: output, shape index: {}]
  %s6 = sld [smem:[#allocation0]]
  $region65: #{tpu_custom_call.1} parent=0
    _
  %s8 = ssub.s32 1, %s6
  %s9 = scalar_select 0, %s8, %s6
  $region1: #{tpu_custom_call.1} parent=0
    #allocation2 [shape = 'u8[4096]{0}', space=vmem, size = 0x1000, scoped, tag = 'input window, operand 0']
    #allocation3 [shape = 's32[2]{0}', space=sflag, size = 0x8, scoped, tag = 'scoped memory for tpu_custom_call.1']
    #allocation4 [shape = 's32[2]{0}', space=sflag, size = 0x8, scoped, tag = 'scoped memory for tpu_custom_call.1']
    #allocation5 [shape = 'u8[3072]{0}', space=vmem, size = 0xc00, scoped, tag = 'input window, operand 1, single buffered']
    #allocation6 [shape = 's32[1]{0}', space=sflag, size = 0x4, scoped, tag = 'scoped memory for tpu_custom_call.1']
    #allocation7 [shape = 'u8[32768]{0}', space=vmem, size = 0x8000, scoped, tag = 'input window, operand 3, single buffered']
    #allocation8 [shape = 'u8[8192]{0}', space=vmem, size = 0x2000, scoped, tag = 'output window, operand 0']
    %10 = vsyncpa [#allocation3], 0
    %s11 = scalar_lea.sflag [#allocation3], 1
    %12 = vsyncpa %s11, 0
    %13 = vsyncpa [#allocation6], 0
    %14 = vsyncpa [#allocation4], 0
    %s15 = scalar_lea.sflag [#allocation4], 1
    %16 = vsyncpa %s15, 0
    loop: start=0, step=1, limit=4
    $region2: #{tpu_custom_call.1} parent=1 // loop_pre_header
      _
    $region3: #{tpu_custom_call.1} parent=1 // loop_header
      %s18 = sphi 0, %s22
      %p19 = scmp.ge.s32.totalorder %s18, 4
      %s28 = sphi 0, %s30
      %s31 = sphi 0, %s28
      %s32 = sphi 0, %s31
      %s48 = sphi 0, %s32
      %s52 = sphi 0, %s52
      %s54 = sphi 0, %s52
      %s55 = sphi 0, %s54
      %s69 = sphi 0, %s55
      %s73 = sphi 0, %s73
      %s75 = sphi 0, %s73
      %s76 = sphi 0, %s75
      %s90 = sphi 0, %s76
      %s94 = sphi 0, %s94
      %s96 = sphi 0, %s94
      %s97 = sphi 0, %s96
      %s111 = sphi 0, %s97
      %s115 = sphi 0, %s115
      %s117 = sphi 0, %s115
      %s118 = sphi 0, %s117
      %s132 = sphi 0, %s118
      %s138 = sphi 0, %s140
      %s141 = sphi 0, %s138
      %s142 = sphi 0, %s141
      %s158 = sphi 0, %s142
    $region4: #{tpu_custom_call.1} parent=1 // loop_header_branch
      %21 = sbr.rel (%p19) target = $region8
    $region5: #{tpu_custom_call.1} parent=1 // loop_body
      %s23 = ssub.s32 %s18, 1
      %s24 = ssub.s32 %s18, 2
      %s25 = sadd.s32 %s18, 1
      %s26 = ssub.s32 %s18, %s25
      %p27 = scmp.eq.s32.totalorder %s26, 0
      %s29 = sadd.s32 %s28, 1
      %s30 = scalar_select %p27, %s28, %s29
      %p33 = pneg %p27
      %p34 = scmp.eq.s32.totalorder %s18, 1
      %p35 = por %p33, %p34
      %p36 = scmp.ne.s32.totalorder %s28, %s31
      %p37 = scmp.eq.s32.totalorder %s18, 0
      %p38 = por %p36, %p37
      %p39 = scmp.ne.s32.totalorder %s28, %s31
      %p40 = scmp.eq.s32.totalorder %s23, 1
      %p41 = por %p39, %p40
      %p42 = scmp.ne.s32.totalorder %s31, %s32
      %p43 = scmp.eq.s32.totalorder %s23, 0
      %p44 = por %p42, %p43
      %p45 = scmp.ne.s32.totalorder %s31, %s32
      %p46 = scmp.eq.s32.totalorder %s24, 1
      %p47 = por %p45, %p46
      %p49 = scmp.ne.s32.totalorder %s32, %s48
      %p50 = scmp.eq.s32.totalorder %s24, 0
      %p51 = por %p49, %p50
      %s53 = sadd.s32 %s52, 1
      %p56 = scmp.eq.s32.totalorder %s18, 1
      %p57 = scmp.ne.s32.totalorder %s52, %s54
      %p58 = scmp.eq.s32.totalorder %s18, 0
      %p59 = por %p57, %p58
      %p60 = scmp.ne.s32.totalorder %s52, %s54
      %p61 = scmp.eq.s32.totalorder %s23, 1
      %p62 = por %p60, %p61
      %p63 = scmp.ne.s32.totalorder %s54, %s55
      %p64 = scmp.eq.s32.totalorder %s23, 0
      %p65 = por %p63, %p64
      %p66 = scmp.ne.s32.totalorder %s54, %s55
      %p67 = scmp.eq.s32.totalorder %s24, 1
      %p68 = por %p66, %p67
      %p70 = scmp.ne.s32.totalorder %s55, %s69
      %p71 = scmp.eq.s32.totalorder %s24, 0
      %p72 = por %p70, %p71
      %s74 = sadd.s32 %s73, 1
      %p77 = scmp.eq.s32.totalorder %s18, 1
      %p78 = scmp.ne.s32.totalorder %s73, %s75
      %p79 = scmp.eq.s32.totalorder %s18, 0
      %p80 = por %p78, %p79
      %p81 = scmp.ne.s32.totalorder %s73, %s75
      %p82 = scmp.eq.s32.totalorder %s23, 1
      %p83 = por %p81, %p82
      %p84 = scmp.ne.s32.totalorder %s75, %s76
      %p85 = scmp.eq.s32.totalorder %s23, 0
      %p86 = por %p84, %p85
      %p87 = scmp.ne.s32.totalorder %s75, %s76
      %p88 = scmp.eq.s32.totalorder %s24, 1
      %p89 = por %p87, %p88
      %p91 = scmp.ne.s32.totalorder %s76, %s90
      %p92 = scmp.eq.s32.totalorder %s24, 0
      %p93 = por %p91, %p92
      %s95 = sadd.s32 %s94, 1
      %p98 = scmp.eq.s32.totalorder %s18, 1
      %p99 = scmp.ne.s32.totalorder %s94, %s96
      %p100 = scmp.eq.s32.totalorder %s18, 0
      %p101 = por %p99, %p100
      %p102 = scmp.ne.s32.totalorder %s94, %s96
      %p103 = scmp.eq.s32.totalorder %s23, 1
      %p104 = por %p102, %p103
      %p105 = scmp.ne.s32.totalorder %s96, %s97
      %p106 = scmp.eq.s32.totalorder %s23, 0
      %p107 = por %p105, %p106
      %p108 = scmp.ne.s32.totalorder %s96, %s97
      %p109 = scmp.eq.s32.totalorder %s24, 1
      %p110 = por %p108, %p109
      %p112 = scmp.ne.s32.totalorder %s97, %s111
      %p113 = scmp.eq.s32.totalorder %s24, 0
      %p114 = por %p112, %p113
      %s116 = sadd.s32 %s115, 1
      %p119 = scmp.eq.s32.totalorder %s18, 1
      %p120 = scmp.ne.s32.totalorder %s115, %s117
      %p121 = scmp.eq.s32.totalorder %s18, 0
      %p122 = por %p120, %p121
      %p123 = scmp.ne.s32.totalorder %s115, %s117
      %p124 = scmp.eq.s32.totalorder %s23, 1
      %p125 = por %p123, %p124
      %p126 = scmp.ne.s32.totalorder %s117, %s118
      %p127 = scmp.eq.s32.totalorder %s23, 0
      %p128 = por %p126, %p127
      %p129 = scmp.ne.s32.totalorder %s117, %s118
      %p130 = scmp.eq.s32.totalorder %s24, 1
      %p131 = por %p129, %p130
      %p133 = scmp.ne.s32.totalorder %s118, %s132
      %p134 = scmp.eq.s32.totalorder %s24, 0
      %p135 = por %p133, %p134
      %s136 = ssub.s32 %s18, %s25
      %p137 = scmp.eq.s32.totalorder %s136, 0
      %s139 = sadd.s32 %s138, 1
      %s140 = scalar_select %p137, %s138, %s139
      %p143 = pneg %p137
      %p144 = scmp.eq.s32.totalorder %s18, 1
      %p145 = por %p143, %p144
      %p146 = scmp.ne.s32.totalorder %s138, %s141
      %p147 = scmp.eq.s32.totalorder %s18, 0
      %p148 = por %p146, %p147
      %p149 = scmp.ne.s32.totalorder %s138, %s141
      %p150 = scmp.eq.s32.totalorder %s23, 1
      %p151 = por %p149, %p150
      %p152 = scmp.ne.s32.totalorder %s141, %s142
      %p153 = scmp.eq.s32.totalorder %s23, 0
      %p154 = por %p152, %p153
      %p155 = scmp.ne.s32.totalorder %s141, %s142
      %p156 = scmp.eq.s32.totalorder %s24, 1
      %p157 = por %p155, %p156
      %p159 = scmp.ne.s32.totalorder %s142, %s158
      %p160 = scmp.eq.s32.totalorder %s24, 0
      %p161 = por %p159, %p160
      %p162 = scmp.le.s32.totalorder 1, %s18
      %p163 = scmp.lt.s32.totalorder %s18, 3
      %p164 = pnand %p162, %p163
      %p165 = pneg %p164
      // Predicated region
      $region9: #{tpu_custom_call.1} parent=5 // pred_check
        _
      $region10: #{tpu_custom_call.1} parent=5 // pred_check_branch
        %167 = sbr.rel (%p164) target = $region12
      $region11: #{tpu_custom_call.1} parent=5 // pred_region
        %s168 = ssub.s32 %s18, 1
        // Predicated region
        $region13: #{tpu_custom_call.1} parent=11 // pred_check
          %p169 = pneg %p65
        $region14: #{tpu_custom_call.1} parent=11 // pred_check_branch
          %171 = sbr.rel (%p169) target = $region16
        $region15: #{tpu_custom_call.1} parent=11 // pred_region
          %s173 = ssub.s32 96, 96
          %174 = vsyncadd [#allocation6], %s173
          %s175 = sshll.u32 [#allocation5], 4
          %s176 = int_to_ptr.vmem [resolvable:$true] %s175
          %181 = dma.hbm_to_vmem [thread:$0]  %s1, 96, %s176, [#allocation6], 32, 32, 2
        $region16: #{tpu_custom_call.1} parent=11 // pred_fallthru
          _
        // Predicated region
        $region17: #{tpu_custom_call.1} parent=11 // pred_check
          %p182 = pneg %p86
        $region18: #{tpu_custom_call.1} parent=11 // pred_check_branch
          %184 = sbr.rel (%p182) target = $region20
        $region19: #{tpu_custom_call.1} parent=11 // pred_region
          _
        $region20: #{tpu_custom_call.1} parent=11 // pred_fallthru
          _
        // Predicated region
        $region21: #{tpu_custom_call.1} parent=11 // pred_check
          %p185 = pneg %p107
        $region22: #{tpu_custom_call.1} parent=11 // pred_check_branch
          %187 = sbr.rel (%p185) target = $region24
        $region23: #{tpu_custom_call.1} parent=11 // pred_region
          %s189 = ssub.s32 1024, 1024
          %190 = vsyncadd [#allocation6], %s189
          %s191 = sshll.u32 [#allocation7], 4
          %s192 = int_to_ptr.vmem [resolvable:$true] %s191
          %197 = dma.hbm_to_vmem [thread:$0]  %s3, 1024, %s192, [#allocation6], 64, 64, 4
        $region24: #{tpu_custom_call.1} parent=11 // pred_fallthru
          _
        // Predicated region
        $region25: #{tpu_custom_call.1} parent=11 // pred_check
          %p198 = pneg %p128
        $region26: #{tpu_custom_call.1} parent=11 // pred_check_branch
          %200 = sbr.rel (%p198) target = $region28
        $region27: #{tpu_custom_call.1} parent=11 // pred_region
          _
        $region28: #{tpu_custom_call.1} parent=11 // pred_fallthru
          _
      $region12: #{tpu_custom_call.1} parent=5 // pred_fallthru
        _
      %p201 = scmp.lt.s32.totalorder %s18, 2
      // Predicated region
      $region29: #{tpu_custom_call.1} parent=5 // pred_check
        %p202 = pneg %p201
      $region30: #{tpu_custom_call.1} parent=5 // pred_check_branch
        %204 = sbr.rel (%p202) target = $region32
      $region31: #{tpu_custom_call.1} parent=5 // pred_region
        // Predicated region
        $region33: #{tpu_custom_call.1} parent=31 // pred_check
          %p205 = pneg %p38
        $region34: #{tpu_custom_call.1} parent=31 // pred_check_branch
          %207 = sbr.rel (%p205) target = $region36
        $region35: #{tpu_custom_call.1} parent=31 // pred_region
          %s208 = sand.u32 %s28, 1
          %s209 = scalar_lea.sflag [#allocation3], %s208
          %s210 = sand.u32 %s28, 1
          %s211 = smul.addr %s210, 4
          %s212 = scalar_lea.vmem [#allocation2], %s211
          %s214 = ssub.s32 64, 64
          %215 = vsyncadd %s209, %s214
          %s216 = smul.addr %s18, 2
          %s217 = smul.addr %s216, 32
          %s218 = scalar_lea.hbm %s0, %s217
          %s220 = sshll.u32 %s212, 4
          %s221 = int_to_ptr.vmem [resolvable:$true] %s220
          %223 = dma.hbm_to_vmem [thread:$0]  %s218, 64, %s221, %s209
        $region36: #{tpu_custom_call.1} parent=31 // pred_fallthru
          _
      $region32: #{tpu_custom_call.1} parent=5 // pred_fallthru
        _
      %p224 = scmp.le.s32.totalorder 1, %s18
      %p225 = scmp.lt.s32.totalorder %s18, 3
      %p226 = pnand %p224, %p225
      %p227 = pneg %p226
      // Predicated region
      $region37: #{tpu_custom_call.1} parent=5 // pred_check
        _
      $region38: #{tpu_custom_call.1} parent=5 // pred_check_branch
        %229 = sbr.rel (%p226) target = $region40
      $region39: #{tpu_custom_call.1} parent=5 // pred_region
        %s230 = ssub.s32 %s18, 1
        %s231 = sand.u32 %s31, 1
        %s232 = scalar_lea.sflag [#allocation3], %s231
        %s233 = sand.u32 %s31, 1
        %s234 = smul.addr %s233, 4
        %s235 = scalar_lea.vmem [#allocation2], %s234
        // Predicated region
        $region41: #{tpu_custom_call.1} parent=39 // pred_check
          %p236 = pneg %p44
        $region42: #{tpu_custom_call.1} parent=39 // pred_check_branch
          %238 = sbr.rel (%p236) target = $region44
        $region43: #{tpu_custom_call.1} parent=39 // pred_region
          %239 = dma.done %s232, 64
        $region44: #{tpu_custom_call.1} parent=39 // pred_fallthru
          _
        // Predicated region
        $region45: #{tpu_custom_call.1} parent=39 // pred_check
          %p240 = pneg %p65
        $region46: #{tpu_custom_call.1} parent=39 // pred_check_branch
          %242 = sbr.rel (%p240) target = $region48
        $region47: #{tpu_custom_call.1} parent=39 // pred_region
          %243 = dma.done [#allocation6], 96
        $region48: #{tpu_custom_call.1} parent=39 // pred_fallthru
          _
        // Predicated region
        $region49: #{tpu_custom_call.1} parent=39 // pred_check
          %p244 = pneg %p107
        $region50: #{tpu_custom_call.1} parent=39 // pred_check_branch
          %246 = sbr.rel (%p244) target = $region52
        $region51: #{tpu_custom_call.1} parent=39 // pred_region
          %247 = dma.done [#allocation6], 1024
        $region52: #{tpu_custom_call.1} parent=39 // pred_fallthru
          _
        %s248 = sand.u32 %s31, 1
        %s249 = scalar_lea.sflag [#allocation3], %s248
        %s250 = sand.u32 %s31, 1
        %s251 = smul.addr %s250, 4
        %s252 = scalar_lea.vmem [#allocation2], %s251
        %p253 = pneg %p44
        %p254 = pneg %p41
        %p255 = pneg %p65
        %p256 = pneg %p62
        %p257 = pneg %p86
        %p258 = pneg %p83
        %p259 = pneg %p107
        %p260 = pneg %p104
        %p261 = pneg %p128
        %p262 = pneg %p125
        %p263 = pneg %p154
        %p264 = pneg %p151
        %s265 = sand.u32 %s141, 1
        %s266 = scalar_lea.sflag [#allocation4], %s265
        %s267 = sand.u32 %s141, 1
        %s268 = smul.addr %s267, 8
        %s269 = scalar_lea.vmem [#allocation8], %s268
        %v272 = vld [vmem:[%s235] sm:$0x3]
        %274 = vrot.lane.b32.xlu0 %v272, 112
        %v275 = vpop.permute.xlu0 %274
        %v277 = vmax.bf16 %v272, %v275
        %278 = vrot.lane.b32.xlu0 %v272, 96
        %v279 = vpop.permute.xlu0 %278
        %v281 = vmax.bf16 %v277, %v279
        %282 = vrot.lane.b32.xlu0 %v272, 80
        %v283 = vpop.permute.xlu0 %282
        %v285 = vmax.bf16 %v281, %v283
        %286 = vrot.lane.b32.xlu0 %v272, 64
        %v287 = vpop.permute.xlu0 %286
        %v289 = vmax.bf16 %v285, %v287
        %290 = vrot.lane.b32.xlu0 %v272, 48
        %v291 = vpop.permute.xlu0 %290
        %v293 = vmax.bf16 %v289, %v291
        %294 = vrot.lane.b32.xlu0 %v272, 32
        %v295 = vpop.permute.xlu0 %294
        %v297 = vmax.bf16 %v293, %v295
        %298 = vrot.lane.b32.xlu0 %v272, 16
        %v299 = vpop.permute.xlu0 %298
        %v301 = vmax.bf16 %v297, %v299
        %v302 = vld [vmem:[%s235 + $0x2] sm:$0x3]
        %v303 = vmax.bf16 %v301, %v302
        %305 = vrot.lane.b32.xlu0 %v302, 112
        %v306 = vpop.permute.xlu0 %305
        %v308 = vmax.bf16 %v303, %v306
        %309 = vrot.lane.b32.xlu0 %v302, 96
        %v310 = vpop.permute.xlu0 %309
        %v312 = vmax.bf16 %v308, %v310
        %313 = vrot.lane.b32.xlu0 %v302, 80
        %v314 = vpop.permute.xlu0 %313
        %v316 = vmax.bf16 %v312, %v314
        %317 = vrot.lane.b32.xlu0 %v302, 64
        %v318 = vpop.permute.xlu0 %317
        %v320 = vmax.bf16 %v316, %v318
        %321 = vrot.lane.b32.xlu0 %v302, 48
        %v322 = vpop.permute.xlu0 %321
        %v324 = vmax.bf16 %v320, %v322
        %325 = vrot.lane.b32.xlu0 %v302, 32
        %v326 = vpop.permute.xlu0 %325
        %v328 = vmax.bf16 %v324, %v326
        %329 = vrot.lane.b32.xlu0 %v302, 16
        %v330 = vpop.permute.xlu0 %329
        %v332 = vmax.bf16 %v328, %v330
        %vm333 = vcmask 9216
        %v336 = vsel %vm333, %v332, 4286644096
        %338 = vmax.xlane.bf16.xlu0 %v336
        %v339 = vpop.xlane.xlu0 %338
        %vm340 = vcmask 25616
        %v341 = vsel %vm340, %v332, 4286644096
        %343 = vmax.xlane.bf16.xlu0 %v341
        %v344 = vpop.xlane.xlu0 %343
        %vm345 = vcmask 42016
        %v346 = vsel %vm345, %v332, 4286644096
        %348 = vmax.xlane.bf16.xlu0 %v346
        %v349 = vpop.xlane.xlu0 %348
        %vm350 = vcmask 58416
        %v351 = vsel %vm350, %v332, 4286644096
        %353 = vmax.xlane.bf16.xlu0 %v351
        %v354 = vpop.xlane.xlu0 %353
        %vm355 = vcmask 74816
        %v356 = vsel %vm355, %v332, 4286644096
        %358 = vmax.xlane.bf16.xlu0 %v356
        %v359 = vpop.xlane.xlu0 %358
        %vm360 = vcmask 91216
        %v361 = vsel %vm360, %v332, 4286644096
        %363 = vmax.xlane.bf16.xlu0 %v361
        %v364 = vpop.xlane.xlu0 %363
        %vm365 = vcmask 107616
        %v366 = vsel %vm365, %v332, 4286644096
        %368 = vmax.xlane.bf16.xlu0 %v366
        %v369 = vpop.xlane.xlu0 %368
        %vm370 = vcmask 124016
        %v371 = vsel %vm370, %v332, 4286644096
        %373 = vmax.xlane.bf16.xlu0 %v371
        %v374 = vpop.xlane.xlu0 %373
        %v376 = vunpack.c.l.b16 %v339
        %v377 = vlaneseq
        %v378 = vand.u32 %v377, 127
        %v379 = vlaneseq
        %v380 = vshrl.u32 %v379, 7
        %v381 = vsub.s32 %v378, %v380
        %v382 = vrot.slane %v376, %v381
        %v383 = vpack.c.b16 %v382, %v382
        %v386 = vunpack.c.l.b16 %v344
        %v387 = vlaneseq
        %v388 = vshrl.u32 %v387, 7
        %v389 = vsub.s32 %v378, %v388
        %v390 = vrot.slane %v386, %v389
        %v391 = vpack.c.b16 %v390, %v390
        %v394 = vunpack.c.l.b16 %v349
        %v395 = vlaneseq
        %v396 = vshrl.u32 %v395, 7
        %v397 = vsub.s32 %v378, %v396
        %v398 = vrot.slane %v394, %v397
        %v399 = vpack.c.b16 %v398, %v398
        %v401 = vunpack.c.l.b16 %v354
        %v402 = vlaneseq
        %v403 = vshrl.u32 %v402, 7
        %v404 = vsub.s32 %v378, %v403
        %v405 = vrot.slane %v401, %v404
        %v406 = vpack.c.b16 %v405, %v405
        %v409 = vunpack.c.l.b16 %v359
        %v410 = vlaneseq
        %v411 = vshrl.u32 %v410, 7
        %v412 = vsub.s32 %v378, %v411
        %v413 = vrot.slane %v409, %v412
        %v414 = vpack.c.b16 %v413, %v413
        %v416 = vunpack.c.l.b16 %v364
        %v417 = vlaneseq
        %v418 = vshrl.u32 %v417, 7
        %v419 = vsub.s32 %v378, %v418
        %v420 = vrot.slane %v416, %v419
        %v421 = vpack.c.b16 %v420, %v420
        %v424 = vunpack.c.l.b16 %v369
        %v425 = vlaneseq
        %v426 = vshrl.u32 %v425, 7
        %v427 = vsub.s32 %v378, %v426
        %v428 = vrot.slane %v424, %v427
        %v429 = vpack.c.b16 %v428, %v428
        %v431 = vunpack.c.l.b16 %v374
        %v432 = vlaneseq
        %v433 = vshrl.u32 %v432, 7
        %v434 = vsub.s32 %v378, %v433
        %v435 = vrot.slane %v431, %v434
        %v436 = vpack.c.b16 %v435, %v435
        %vm438 = vcmask 1040384
        %vm439 = vsmask.f32 256
        %vm440 = vmand %vm438, %vm439
        %v441 = vsel %vm440, %v383, %v391
        %vm442 = vcmask 1040384
        %v445 = vsel %vm442, %v441, %v399
        %vm447 = vcmask 1041408
        %vm448 = vsmask.f32 1280
        %vm449 = vmand %vm447, %vm448
        %v450 = vsel %vm449, %v445, %v406
        %vm451 = vcmask 1041408
        %v454 = vsel %vm451, %v450, %v414
        %vm456 = vcmask 1042432
        %vm457 = vsmask.f32 2304
        %vm458 = vmand %vm456, %vm457
        %v459 = vsel %vm458, %v454, %v421
        %vm460 = vcmask 1042432
        %v463 = vsel %vm460, %v459, %v429
        %vm465 = vcmask 1043456
        %vm466 = vsmask.f32 3328
        %vm467 = vmand %vm465, %vm466
        %v468 = vsel %vm467, %v463, %v436
        %vm469 = vcmask 1043456
        %v472 = vsel %vm469, %v468, 0
        %vm474 = vcmask 1044480
        %vm475 = vsmask.f32 4352
        %vm476 = vmand %vm474, %vm475
        %v477 = vsel %vm476, %v472, 0
        %vm478 = vcmask 1044480
        %v480 = vsel %vm478, %v477, 0
        %vm482 = vcmask 1045504
        %vm483 = vsmask.f32 5376
        %vm484 = vmand %vm482, %vm483
        %v485 = vsel %vm484, %v480, 0
        %vm486 = vcmask 1045504
        %v488 = vsel %vm486, %v485, 0
        %vm490 = vcmask 1046528
        %vm491 = vsmask.f32 6400
        %vm492 = vmand %vm490, %vm491
        %v493 = vsel %vm492, %v488, 0
        %vm494 = vcmask 1046528
        %v496 = vsel %vm494, %v493, 0
        %vm498 = vcmask 1047552
        %vm499 = vsmask.f32 7424
        %vm500 = vmand %vm498, %vm499
        %v501 = vsel %vm500, %v496, 0
        %v505 = vsel %vm440, 0, %v383
        %v508 = vsel %vm442, %v505, %v391
        %v510 = vsel %vm449, %v508, %v399
        %v513 = vsel %vm451, %v510, %v406
        %v515 = vsel %vm458, %v513, %v414
        %v518 = vsel %vm460, %v515, %v421
        %v520 = vsel %vm467, %v518, %v429
        %v522 = vsel %vm469, %v520, 0
        %v524 = vsel %vm476, %v522, 0
        %v526 = vsel %vm478, %v524, 0
        %v528 = vsel %vm484, %v526, 0
        %v530 = vsel %vm486, %v528, 0
        %v532 = vsel %vm492, %v530, 0
        %v534 = vsel %vm494, %v532, 0
        %v536 = vsel %vm500, %v534, 0
        %v537 = vsel %vm440, %v391, %v399
        %v539 = vsel %vm442, %v537, %v406
        %v541 = vsel %vm449, %v539, %v414
        %v543 = vsel %vm451, %v541, %v421
        %v545 = vsel %vm458, %v543, %v429
        %v548 = vsel %vm460, %v545, %v436
        %v550 = vsel %vm467, %v548, 0
        %v552 = vsel %vm469, %v550, 0
        %v554 = vsel %vm476, %v552, 0
        %v556 = vsel %vm478, %v554, 0
        %v558 = vsel %vm484, %v556, 0
        %v560 = vsel %vm486, %v558, 0
        %v562 = vsel %vm492, %v560, 0
        %v564 = vsel %vm494, %v562, 0
        %v566 = vsel %vm500, %v564, 0
        %v567 = vld [vmem:[#allocation5] sm:$0x3]
        %s568 = scalar_lea.vmem [#allocation5], 2
        %v569 = vld [vmem:[%s568] sm:$0x3]
        %vm570 = vcmask 31744
        %v572 = vsel %vm570, %v501, 0
        %v575 = vsel %vm451, %v569, 0
        %577 = vmatprep.subr.bf16.mxu0 0
        %578 = vmatpush1.bf16.msra.mxu0 %v575
        %579 = vmatprep.subr.bf16.mxu0 0
        %580 = vmatpush1.bf16.msra.mxu0 0
        %581 = vmatprep.subr.bf16.mxu0 0
        %582 = vmatpush1.bf16.msra.mxu0 0
        %583 = vmatprep.subr.bf16.mxu0 0
        %584 = vmatpush1.bf16.msra.mxu0 0
        %585 = vmatprep.subr.bf16.mxu0 0
        %586 = vmatpush1.bf16.msra.mxu0 0
        %587 = vmatprep.subr.bf16.mxu0 0
        %588 = vmatpush1.bf16.msra.mxu0 0
        %589 = vmatprep.subr.bf16.mxu0 0
        %590 = vmatpush1.bf16.msra.mxu0 0
        %591 = vmatprep.subr.bf16.mxu0 0
        %592 = vmatpush1.bf16.msra.mxu0 0
        %593 = vmatprep.subr.bf16.mxu0 0
        %594 = vmatpush1.bf16.msra.mxu0 0
        %595 = vmatprep.subr.bf16.mxu0 0
        %596 = vmatpush1.bf16.msra.mxu0 0
        %597 = vmatprep.subr.bf16.mxu0 0
        %598 = vmatpush1.bf16.msra.mxu0 0
        %599 = vmatprep.subr.bf16.mxu0 0
        %600 = vmatpush1.bf16.msra.mxu0 0
        %601 = vmatprep.subr.bf16.mxu0 0
        %602 = vmatpush1.bf16.msra.mxu0 0
        %603 = vmatprep.subr.bf16.mxu0 0
        %604 = vmatpush1.bf16.msra.mxu0 0
        %605 = vmatprep.subr.bf16.mxu0 0
        %606 = vmatpush1.bf16.msra.mxu0 0
        %607 = vmatprep.subr.bf16.mxu0 0
        %608 = vmatpush1.bf16.msra.mxu0 0
        %609 = vmatprep.mubr.bf16.mxu0 0
        %610 = vmatmul.mubr.bf16.gmra.mrb[0].mxu0 %v572
        %v611 = vpop.f32.mrb[0].mxu0
        %v612 = vadd.f32 0.0, %v611
        %v613 = vpop.f32.mrb[0].mxu0
        %v614 = vpop.f32.mrb[0].mxu0
        %v615 = vadd.f32 0.0, %v614
        %v616 = vpop.f32.mrb[0].mxu0
        %617 = vdwg.mxu0
        %v619 = vsel %vm570, %v536, 0
        %v622 = vsel %vm451, %v567, 0
        %624 = vmatprep.subr.bf16.mxu0 0
        %625 = vmatpush1.bf16.msra.mxu0 %v622
        %626 = vmatprep.subr.bf16.mxu0 0
        %627 = vmatpush1.bf16.msra.mxu0 0
        %628 = vmatprep.subr.bf16.mxu0 0
        %629 = vmatpush1.bf16.msra.mxu0 0
        %630 = vmatprep.subr.bf16.mxu0 0
        %631 = vmatpush1.bf16.msra.mxu0 0
        %632 = vmatprep.subr.bf16.mxu0 0
        %633 = vmatpush1.bf16.msra.mxu0 0
        %634 = vmatprep.subr.bf16.mxu0 0
        %635 = vmatpush1.bf16.msra.mxu0 0
        %636 = vmatprep.subr.bf16.mxu0 0
        %637 = vmatpush1.bf16.msra.mxu0 0
        %638 = vmatprep.subr.bf16.mxu0 0
        %639 = vmatpush1.bf16.msra.mxu0 0
        %640 = vmatprep.subr.bf16.mxu0 0
        %641 = vmatpush1.bf16.msra.mxu0 0
        %642 = vmatprep.subr.bf16.mxu0 0
        %643 = vmatpush1.bf16.msra.mxu0 0
        %644 = vmatprep.subr.bf16.mxu0 0
        %645 = vmatpush1.bf16.msra.mxu0 0
        %646 = vmatprep.subr.bf16.mxu0 0
        %647 = vmatpush1.bf16.msra.mxu0 0
        %648 = vmatprep.subr.bf16.mxu0 0
        %649 = vmatpush1.bf16.msra.mxu0 0
        %650 = vmatprep.subr.bf16.mxu0 0
        %651 = vmatpush1.bf16.msra.mxu0 0
        %652 = vmatprep.subr.bf16.mxu0 0
        %653 = vmatpush1.bf16.msra.mxu0 0
        %654 = vmatprep.subr.bf16.mxu0 0
        %655 = vmatpush1.bf16.msra.mxu0 0
        %656 = vmatprep.mubr.bf16.mxu0 0
        %657 = vmatmul.mubr.bf16.gmra.mrb[0].mxu0 %v619
        %v658 = vpop.f32.mrb[0].mxu0
        %v659 = vadd.f32 %v612, %v658
        %v660 = vpop.f32.mrb[0].mxu0
        %v661 = vpop.f32.mrb[0].mxu0
        %v662 = vadd.f32 %v615, %v661
        %v663 = vpop.f32.mrb[0].mxu0
        %664 = vdwg.mxu0
        %s665 = scalar_lea.vmem [#allocation5], 4
        %v666 = vld [vmem:[%s665] sm:$0x3]
        %v668 = vsel %vm570, %v566, 0
        %v671 = vsel %vm451, %v666, 0
        %673 = vmatprep.subr.bf16.mxu0 0
        %674 = vmatpush1.bf16.msra.mxu0 %v671
        %675 = vmatprep.subr.bf16.mxu0 0
        %676 = vmatpush1.bf16.msra.mxu0 0
        %677 = vmatprep.subr.bf16.mxu0 0
        %678 = vmatpush1.bf16.msra.mxu0 0
        %679 = vmatprep.subr.bf16.mxu0 0
        %680 = vmatpush1.bf16.msra.mxu0 0
        %681 = vmatprep.subr.bf16.mxu0 0
        %682 = vmatpush1.bf16.msra.mxu0 0
        %683 = vmatprep.subr.bf16.mxu0 0
        %684 = vmatpush1.bf16.msra.mxu0 0
        %685 = vmatprep.subr.bf16.mxu0 0
        %686 = vmatpush1.bf16.msra.mxu0 0
        %687 = vmatprep.subr.bf16.mxu0 0
        %688 = vmatpush1.bf16.msra.mxu0 0
        %689 = vmatprep.subr.bf16.mxu0 0
        %690 = vmatpush1.bf16.msra.mxu0 0
        %691 = vmatprep.subr.bf16.mxu0 0
        %692 = vmatpush1.bf16.msra.mxu0 0
        %693 = vmatprep.subr.bf16.mxu0 0
        %694 = vmatpush1.bf16.msra.mxu0 0
        %695 = vmatprep.subr.bf16.mxu0 0
        %696 = vmatpush1.bf16.msra.mxu0 0
        %697 = vmatprep.subr.bf16.mxu0 0
        %698 = vmatpush1.bf16.msra.mxu0 0
        %699 = vmatprep.subr.bf16.mxu0 0
        %700 = vmatpush1.bf16.msra.mxu0 0
        %701 = vmatprep.subr.bf16.mxu0 0
        %702 = vmatpush1.bf16.msra.mxu0 0
        %703 = vmatprep.subr.bf16.mxu0 0
        %704 = vmatpush1.bf16.msra.mxu0 0
        %705 = vmatprep.mubr.bf16.mxu0 0
        %706 = vmatmul.mubr.bf16.gmra.mrb[0].mxu0 %v668
        %v707 = vpop.f32.mrb[0].mxu0
        %v708 = vadd.f32 0.0, %v707
        %v709 = vpop.f32.mrb[0].mxu0
        %v710 = vpop.f32.mrb[0].mxu0
        %v711 = vadd.f32 0.0, %v710
        %v712 = vpop.f32.mrb[0].mxu0
        %713 = vdwg.mxu0
        %v714 = vadd.f32 %v659, %v708
        %v715 = vadd.f32 %v662, %v711
        %v716 = vld [vmem:[%s2] sm:$0x1]
        %v718 = vlaneseq
        %v719 = vshrl.u32 %v718, 7
        %v720 = vsub.s32 0, %v719
        %v721 = vrot.slane %v716, %v720
        %v723 = vadd.f32 %v714, %v721
        %v724 = vadd.f32 %v715, %v721
        %v725 = vmax.f32 %v723, 0.0
        %v726 = vmax.f32 %v724, 0.0
        %v727 = vpack.c.bf16 %v726, %v725
        %v728 = vld [vmem:[#allocation7] sm:$0xf]
        %v729 = vld [vmem:[#allocation7 + $0x4] sm:$0xf]
        %v730 = vld [vmem:[#allocation7 + $0x8] sm:$0xf]
        %v731 = vld [vmem:[#allocation7 + $0xc] sm:$0xf]
        %v732 = vld [vmem:[#allocation7 + $0x10] sm:$0xf]
        %v733 = vld [vmem:[#allocation7 + $0x14] sm:$0xf]
        %v734 = vld [vmem:[#allocation7 + $0x18] sm:$0xf]
        %v735 = vld [vmem:[#allocation7 + $0x1c] sm:$0xf]
        %v736 = vld [vmem:[#allocation7 + $0x20] sm:$0xf]
        %v737 = vld [vmem:[#allocation7 + $0x24] sm:$0xf]
        %v738 = vld [vmem:[#allocation7 + $0x28] sm:$0xf]
        %v739 = vld [vmem:[#allocation7 + $0x2c] sm:$0xf]
        %v740 = vld [vmem:[#allocation7 + $0x30] sm:$0xf]
        %v741 = vld [vmem:[#allocation7 + $0x34] sm:$0xf]
        %v742 = vld [vmem:[#allocation7 + $0x38] sm:$0xf]
        %v743 = vld [vmem:[#allocation7 + $0x3c] sm:$0xf]
        %v744 = vld [vmem:[%s4] sm:$0x1]
        %v746 = vlaneseq
        %v747 = vshrl.u32 %v746, 7
        %v748 = vsub.s32 0, %v747
        %v749 = vrot.slane %v744, %v748
        %v767 = vunpack.c.l.b16 %v728
        %v768 = vunpack.c.l.b16 %v729
        %v769 = vunpack.c.l.b16 %v730
        %v770 = vunpack.c.l.b16 %v731
        %v771 = vunpack.c.l.b16 %v732
        %v772 = vunpack.c.l.b16 %v733
        %v773 = vunpack.c.l.b16 %v734
        %v774 = vunpack.c.l.b16 %v735
        %v775 = vunpack.c.l.b16 %v736
        %v776 = vunpack.c.l.b16 %v737
        %v777 = vunpack.c.l.b16 %v738
        %v778 = vunpack.c.l.b16 %v739
        %v779 = vunpack.c.l.b16 %v740
        %v780 = vunpack.c.l.b16 %v741
        %v781 = vunpack.c.l.b16 %v742
        %v782 = vunpack.c.l.b16 %v743
        %v783 = vpack.c.b16 %v768, %v767
        %v784 = vpack.c.b16 %v770, %v769
        %v785 = vpack.c.b16 %v772, %v771
        %v786 = vpack.c.b16 %v774, %v773
        %v787 = vpack.c.b16 %v776, %v775
        %v788 = vpack.c.b16 %v778, %v777
        %v789 = vpack.c.b16 %v780, %v779
        %v790 = vpack.c.b16 %v782, %v781
        %799 = vmatprep.subr.bf16.mxu0 0
        %800 = vmatpush1.bf16.msra.mxu0 %v783
        %801 = vmatprep.subr.bf16.mxu0 0
        %802 = vmatpush1.bf16.msra.mxu0 %v784
        %803 = vmatprep.subr.bf16.mxu0 0
        %804 = vmatpush1.bf16.msra.mxu0 %v785
        %805 = vmatprep.subr.bf16.mxu0 0
        %806 = vmatpush1.bf16.msra.mxu0 %v786
        %807 = vmatprep.subr.bf16.mxu0 0
        %808 = vmatpush1.bf16.msra.mxu0 %v787
        %809 = vmatprep.subr.bf16.mxu0 0
        %810 = vmatpush1.bf16.msra.mxu0 %v788
        %811 = vmatprep.subr.bf16.mxu0 0
        %812 = vmatpush1.bf16.msra.mxu0 %v789
        %813 = vmatprep.subr.bf16.mxu0 0
        %814 = vmatpush1.bf16.msra.mxu0 %v790
        %815 = vmatprep.subr.bf16.mxu0 0
        %816 = vmatpush1.bf16.msra.mxu0 0
        %817 = vmatprep.subr.bf16.mxu0 0
        %818 = vmatpush1.bf16.msra.mxu0 0
        %819 = vmatprep.subr.bf16.mxu0 0
        %820 = vmatpush1.bf16.msra.mxu0 0
        %821 = vmatprep.subr.bf16.mxu0 0
        %822 = vmatpush1.bf16.msra.mxu0 0
        %823 = vmatprep.subr.bf16.mxu0 0
        %824 = vmatpush1.bf16.msra.mxu0 0
        %825 = vmatprep.subr.bf16.mxu0 0
        %826 = vmatpush1.bf16.msra.mxu0 0
        %827 = vmatprep.subr.bf16.mxu0 0
        %828 = vmatpush1.bf16.msra.mxu0 0
        %829 = vmatprep.subr.bf16.mxu0 0
        %830 = vmatpush1.bf16.msra.mxu0 0
        %831 = vmatprep.mubr.bf16.mxu0 0
        %832 = vmatmul.mubr.bf16.gmra.mrb[0].mxu0 %v727
        %v833 = vpop.f32.mrb[0].mxu0
        %v834 = vadd.f32 %v749, %v833
        %v835 = vpop.f32.mrb[0].mxu0
        %v836 = vpop.f32.mrb[0].mxu0
        %v837 = vadd.f32 %v749, %v836
        %v838 = vpop.f32.mrb[0].mxu0
        %839 = vdwg.mxu0
        %v840 = vmax.f32 %v834, 0.0
        %v841 = vmax.f32 %v837, 0.0
        %v842 = vpack.c.bf16 %v841, %v840
        %v844 = vunpack.c.l.b16 %v842
        %v845 = vunpack.c.h.b16 %v842
        %v846 = vpack.c.b16 %v844, %v844
        %v847 = vpack.c.b16 %v845, %v845
        %850 = vst [vmem:[%s269] sm:$0xf] %v846
        %851 = vst [vmem:[%s269 + $0x4] sm:$0xf] %v847
        %s852 = sand.u32 %s141, 1
        %s853 = scalar_lea.sflag [#allocation4], %s852
        %s854 = sand.u32 %s141, 1
        %s855 = smul.addr %s854, 8
        %s856 = scalar_lea.vmem [#allocation8], %s855
        // Predicated region
        $region53: #{tpu_custom_call.1} parent=39 // pred_check
          %p857 = pneg %p151
        $region54: #{tpu_custom_call.1} parent=39 // pred_check_branch
          %859 = sbr.rel (%p857) target = $region56
        $region55: #{tpu_custom_call.1} parent=39 // pred_region
          %s861 = ssub.s32 128, 128
          %862 = vsyncadd %s853, %s861
          %s863 = smul.addr %s23, 2
          %s864 = smul.addr %s863, 64
          %s865 = scalar_lea.hbm %s5, %s864
          %s866 = sshll.u32 %s856, 4
          %s867 = int_to_ptr.vmem [resolvable:$true] %s866
          %872 = dma.vmem_to_hbm [thread:$0]  %s867, 128, %s865, %s853, 64, 64, 4
        $region56: #{tpu_custom_call.1} parent=39 // pred_fallthru
          _
      $region40: #{tpu_custom_call.1} parent=5 // pred_fallthru
        _
      %p873 = scmp.le.s32.totalorder 2, %s18
      // Predicated region
      $region57: #{tpu_custom_call.1} parent=5 // pred_check
        %p874 = pneg %p873
      $region58: #{tpu_custom_call.1} parent=5 // pred_check_branch
        %876 = sbr.rel (%p874) target = $region60
      $region59: #{tpu_custom_call.1} parent=5 // pred_region
        %s877 = ssub.s32 %s18, 2
        // Predicated region
        $region61: #{tpu_custom_call.1} parent=59 // pred_check
          %p878 = pneg %p157
        $region62: #{tpu_custom_call.1} parent=59 // pred_check_branch
          %880 = sbr.rel (%p878) target = $region64
        $region63: #{tpu_custom_call.1} parent=59 // pred_region
          %s881 = sand.u32 %s142, 1
          %s882 = scalar_lea.sflag [#allocation4], %s881
          %s883 = sand.u32 %s142, 1
          %s884 = smul.addr %s883, 8
          %s885 = scalar_lea.vmem [#allocation8], %s884
          %886 = dma.done %s882, 128
        $region64: #{tpu_custom_call.1} parent=59 // pred_fallthru
          _
      $region60: #{tpu_custom_call.1} parent=5 // pred_fallthru
        _
    $region6: #{tpu_custom_call.1} parent=1 // loop_footer
      %s22 = sadd.s32 1, %s18
    $region7: #{tpu_custom_call.1} parent=1 // loop_footer_branch
      %17 = sbr.rel target = $region3
    $region8: #{tpu_custom_call.1} parent=1 // loop_exit
      _
    %887 = vsyncpa [#allocation3], 1
    %s888 = scalar_lea.sflag [#allocation3], 1
    %889 = vsyncpa %s888, 1
    %890 = vsyncpa [#allocation6], 1
    %891 = vsyncpa [#allocation4], 1
    %s892 = scalar_lea.sflag [#allocation4], 1
    %893 = vsyncpa %s892, 1

</llo_original>
